<compile_context>
chip_gen: v6e
topology: v6e:2x2x1
jax: 0.10.0
libtpu: 0.0.40
codegen_flags: <defaults>
</compile_context>

<pallas_src>
import jax
import jax.numpy as jnp
from jax.experimental import pallas as pl
from jax.experimental.pallas import tpu as pltpu

_LANE = 128
_SUBLANE = 8


def _logreg_kernel(x_ref, w_ref, b_ref, o_ref):
    # x_ref: (TILE_B, F) VMEM, native dtype   w_ref: (1, F) f32 VMEM (resident)
    # b_ref: (1, 1) SMEM scalar               o_ref: (TILE_B, 1) VMEM
    x = x_ref[...].astype(jnp.float32)  # upcast in-kernel (v5e has no bf16 VPU)
    # VPU multiply (broadcast of the lane-dense weight row) + XLU lane reduce.
    z = jnp.sum(x * w_ref[...], axis=-1, keepdims=True) + b_ref[0, 0]
    o_ref[...] = jax.nn.sigmoid(z).astype(o_ref.dtype)


def _vmem_capacity_bytes():
    """Physical per-core VMEM, with conservative fallbacks."""
    try:
        return int(pltpu.get_tpu_info().vmem_capacity_bytes)
    except Exception:
        pass
    try:
        kind = jax.devices()[0].device_kind.lower()
        if "v7" in kind or "7x" in kind:
            return 64 * 1024 * 1024          # v7x: 64 MiB per TensorCore
        return 128 * 1024 * 1024             # v4 / v5e / v6e: 128 MiB
    except Exception:
        return 64 * 1024 * 1024              # conservative default


def _plan(batch, num_feature, x_dtype):
    """Pick tile_b (rows per grid step) and a vmem_limit_bytes, by bytes."""
    f_padded = pl.cdiv(max(num_feature, 1), _LANE) * _LANE       # lane padding
    x_itemsize = jnp.dtype(x_dtype).itemsize
    vmem_cap = _vmem_capacity_bytes()

    # Budget for the pipelined (double-buffered) buffers: ~60% of physical VMEM
    # (~38 MiB on v7x, ~77 MiB on v5e/v6e).  Going past ~16-24 MiB per step buys
    # nothing (HBM roofline is already saturated), so cap the per-step budget too.
    pipeline_budget = (vmem_cap * 3) // 5
    per_step_budget = min(pipeline_budget // 2, 24 * 1024 * 1024)

    # Per-row VMEM: lane-padded X block row + lane-padded (., 1) f32 output row
    # (one (8,128) f32 vreg per 8 rows -> 512 bytes/row).  The output padding is
    # what dominates for small F, so it must be accounted for.
    per_row_bytes = f_padded * x_itemsize + 512

    tile_b = per_step_budget // per_row_bytes
    tile_b = min(tile_b, pl.cdiv(max(batch, 1), _SUBLANE) * _SUBLANE)
    tile_b = max(_SUBLANE, (tile_b // _SUBLANE) * _SUBLANE)

    est = (2 * tile_b * f_padded * x_itemsize   # double-buffered X tiles
           + 2 * tile_b * 512                    # double-buffered (tile_b, 1) out tiles
           + _SUBLANE * f_padded * 4             # resident W row
           + (4 << 20))                          # compiler scratch slack
    vmem_limit = int(min(vmem_cap * 7 // 8, max(32 << 20, est)))
    return tile_b, vmem_limit


def logistic_regression(x, w, b, tile_b=None):
    """x: (B, F) any float dtype, w: (F, 1), b: scalar/(1,1) -> sigmoid(x @ w + b), (B, 1)."""
    B, F = x.shape
    w_row = jnp.asarray(w, dtype=jnp.float32).reshape(1, F)     # lane-dense weight row
    b_s = jnp.asarray(b, dtype=jnp.float32).reshape(1, 1)
    out_dtype = x.dtype if jnp.issubdtype(x.dtype, jnp.floating) else jnp.float32

    auto_tile_b, vmem_limit = _plan(B, F, x.dtype)
    if tile_b is None:
        tile_b = auto_tile_b
    tile_b = max(_SUBLANE, (int(tile_b) // _SUBLANE) * _SUBLANE)

    grid = (pl.cdiv(B, tile_b),)   # ragged final block: masked writeback, no jnp.pad

    out = pl.pallas_call(
        _logreg_kernel,
        out_shape=jax.ShapeDtypeStruct((B, 1), out_dtype),
        grid=grid,
        in_specs=[
            pl.BlockSpec((tile_b, F), lambda i: (i, 0)),          # streamed X tiles (native dtype)
            pl.BlockSpec((1, F), lambda i: (0, 0)),               # W row, resident
            pl.BlockSpec(memory_space=pltpu.MemorySpace.SMEM),    # bias scalar in SMEM
        ],
        out_specs=pl.BlockSpec((tile_b, 1), lambda i: (i, 0)),
        compiler_params=pltpu.CompilerParams(
            dimension_semantics=("parallel",),   # shard the batch grid across v7x's 2 TCs
            vmem_limit_bytes=vmem_limit,
        ),
    )(x, w_row, b_s)

    return out


if __name__ == "__main__":
    num_feature = 32
    batch = 8

    key = jax.random.PRNGKey(0)
    kx, kw, kb = jax.random.split(key, 3)

    # Deterministic synthetic parameters (mimic nn.Linear uniform(-1/sqrt(F), 1/sqrt(F)))
    bound = 1.0 / float(num_feature) ** 0.5
    x = jax.random.normal(kx, (batch, num_feature), dtype=jnp.float32)
    w = jax.random.uniform(kw, (num_feature, 1), minval=-bound, maxval=bound,
                           dtype=jnp.float32)
    b = jax.random.uniform(kb, (1, 1), minval=-bound, maxval=bound,
                           dtype=jnp.float32)

    # 1) Basic path.
    out = logistic_regression(x, w, b)
    jax.block_until_ready(out)
    ref = jax.nn.sigmoid(x @ w + b)
    assert out.shape == (batch, 1)
    assert jnp.allclose(out, ref, atol=1e-5), "mismatch vs. reference"

    # 2) Ragged batch (B not a multiple of the sublane/tile) -> partial final block.
    x2 = jax.random.normal(kx, (batch + 5, num_feature), dtype=jnp.float32)
    out2 = logistic_regression(x2, w, b)
    jax.block_until_ready(out2)
    ref2 = jax.nn.sigmoid(x2 @ w + b)
    assert out2.shape == (batch + 5, 1)
    assert jnp.allclose(out2, ref2, atol=1e-5), "mismatch vs. reference (ragged path)"

    # 3) Multi-step grid with a ragged final block (forced small tile).
    x3 = jax.random.normal(kx, (20, num_feature), dtype=jnp.float32)
    out3 = logistic_regression(x3, w, b, tile_b=8)
    jax.block_until_ready(out3)
    ref3 = jax.nn.sigmoid(x3 @ w + b)
    assert out3.shape == (20, 1)
    assert jnp.allclose(out3, ref3, atol=1e-5), "mismatch vs. reference (multi-tile ragged)"

    # 4) Native-dtype streaming: bf16 X stays bf16 over HBM, f32 accumulate in-kernel.
    x4 = x.astype(jnp.bfloat16)
    out4 = logistic_regression(x4, w, b)
    jax.block_until_ready(out4)
    ref4 = jax.nn.sigmoid(x4.astype(jnp.float32) @ w + b)
    assert out4.shape == (batch, 1)
    assert jnp.allclose(out4.astype(jnp.float32), ref4, atol=2e-2), "mismatch (bf16 path)"

    print("KERNEL_OK")
</pallas_src>

<mosaic_0001>
module attributes {stable_mosaic.version = 11 : i64} {
  func.func @_logreg_kernel(%arg0: i32, %arg1: memref<8x32xf32, #tpu.memory_space<vmem>>, %arg2: memref<1x32xf32, #tpu.memory_space<vmem>>, %arg3: memref<1x1xf32, #tpu.memory_space<smem>>, %arg4: memref<8x1xf32, #tpu.memory_space<vmem>>) attributes {dimension_semantics = [#tpu.dimension_semantics<parallel>], iteration_bounds = array<i64: 1>, scalar_prefetch = 0 : i64, scratch_operands = 0 : i64, tpu.core_type = #tpu.core_type<tc>, window_params = [{transform_indices = @transform_0, window_bounds = array<i64: 8, 32>}, {pipeline_mode = #tpu.pipeline_mode<synchronous>, transform_indices = @transform_1, window_bounds = array<i64: 1, 32>}, {transform_indices = @transform_2, window_bounds = array<i64: 1, 1>}, {transform_indices = @transform_3, window_bounds = array<i64: 8, 1>}]} {
    %c0 = arith.constant 0 : index
    %c0_0 = arith.constant 0 : index
    %0 = vector.load %arg1[%c0, %c0_0] : memref<8x32xf32, #tpu.memory_space<vmem>>, vector<8x32xf32>
    %c0_1 = arith.constant 0 : index
    %c0_2 = arith.constant 0 : index
    %1 = vector.load %arg2[%c0_1, %c0_2] : memref<1x32xf32, #tpu.memory_space<vmem>>, vector<1x32xf32>
    %2 = vector.broadcast %1 : vector<1x32xf32> to vector<8x32xf32>
    %3 = arith.mulf %0, %2 : vector<8x32xf32>
    %cst = arith.constant dense<0.000000e+00> : vector<8xf32>
    %4 = vector.multi_reduction <add>, %3, %cst [1] : vector<8x32xf32> to vector<8xf32>
    %5 = vector.shape_cast %4 : vector<8xf32> to vector<8x1xf32>
    %c0_3 = arith.constant 0 : index
    %c0_4 = arith.constant 0 : index
    %6 = memref.load %arg3[%c0_3, %c0_4] : memref<1x1xf32, #tpu.memory_space<smem>>
    %7 = vector.broadcast %6 : f32 to vector<8x1xf32>
    %8 = arith.addf %5, %7 : vector<8x1xf32>
    %9 = arith.negf %8 : vector<8x1xf32>
    %10 = math.exp %9 : vector<8x1xf32>
    %cst_5 = arith.constant 1.000000e+00 : f32
    %11 = vector.broadcast %cst_5 : f32 to vector<8x1xf32>
    %12 = arith.addf %11, %10 : vector<8x1xf32>
    %13 = arith.divf %11, %12 : vector<8x1xf32>
    %c0_6 = arith.constant 0 : index
    %c0_7 = arith.constant 0 : index
    %14 = vector.load %arg4[%c0_6, %c0_7] : memref<8x1xf32, #tpu.memory_space<vmem>>, vector<8x1xf32>
    tpu.vector_store %arg4[%c0_6, %c0_7], %13 {strides = array<i32>} : memref<8x1xf32, #tpu.memory_space<vmem>>, vector<8x1xf32>,
    return
  }
  func.func @transform_0(%arg0: i32) -> (i32, i32) {
    %c0_i32 = arith.constant 0 : i32
    %c0_i32_0 = arith.constant 0 : i32
    return %arg0, %c0_i32 : i32, i32
  }
  func.func @transform_1(%arg0: i32) -> (i32, i32) {
    %c0_i32 = arith.constant 0 : i32
    %c0_i32_0 = arith.constant 0 : i32
    %c0_i32_1 = arith.constant 0 : i32
    return %c0_i32, %c0_i32_0 : i32, i32
  }
  func.func @transform_2(%arg0: i32) -> (i32, i32) {
    %c0_i32 = arith.constant 0 : i32
    %c0_i32_0 = arith.constant 0 : i32
    %c0_i32_1 = arith.constant 0 : i32
    return %c0_i32, %c0_i32_0 : i32, i32
  }
  func.func @transform_3(%arg0: i32) -> (i32, i32) {
    %c0_i32 = arith.constant 0 : i32
    %c0_i32_0 = arith.constant 0 : i32
    return %arg0, %c0_i32 : i32, i32
  }
}

</mosaic_0001>

<llo_original>
// kernel: tpu_custom_call.1
$region0: #{tpu_custom_call.1}
  #allocation0 [shape = 'u32[]', space=smem, size = 0x4, offset = 0x4, fixed_abs, tag = 'smem constant byte address 0x4 - core index']
  #allocation1 [shape = 'u32[144,128]{1,0:T(1,128)}', space=vmem, size = 0x12000, scoped, tag = 'internal scratch']
  #allocation2 [shape = 'f32[1,1]{1,0:T(1,128)S(6)}', space=smem, size = 0x200, scoped, tag = 'scoped memory for tpu_custom_call.1']
  %s0 = inlined_call_operand.hbm [shape: f32[8,32], index: 0, kind: input, shape index: {}]
  %s1 = inlined_call_operand.vmem [shape: f32[1,32], index: 1, kind: input, shape index: {}]
  %s2 = inlined_call_operand.<no memory space> [shape: f32[1,1], index: 2, kind: input, shape index: {}]
  %s3 = inlined_call_operand.vmem [shape: f32[8,1], index: 3, kind: output, shape index: {}]
  %s4 = sld [smem:[#allocation0]]
  $region26: #{tpu_custom_call.1} parent=0
    _
  %s6 = ssub.s32 1, %s4
  %s7 = scalar_select 0, %s6, %s4
  %8 = sst [smem:[#allocation2]] %s2
  $region1: #{tpu_custom_call.1} parent=0
    #allocation3 [shape = 'u8[4096]{0}', space=vmem, size = 0x1000, scoped, tag = 'input window, operand 0, single buffered']
    #allocation4 [shape = 's32[1]{0}', space=sflag, size = 0x4, scoped, tag = 'scoped memory for tpu_custom_call.1']
    %9 = vsyncpa [#allocation4], 0
    // Predicated region
    $region2: #{tpu_custom_call.1} parent=1 // pred_check
      _
    $region3: #{tpu_custom_call.1} parent=1 // pred_check_branch
      %11 = sbr.rel (0) target = $region5
    $region4: #{tpu_custom_call.1} parent=1 // pred_region
      %s13 = ssub.s32 128, 128
      %14 = vsyncadd [#allocation4], %s13
      %s16 = sshll.u32 [#allocation3], 4
      %s17 = int_to_ptr.vmem [resolvable:$true] %s16
      %19 = dma.hbm_to_vmem [thread:$0]  %s0, 128, %s17, [#allocation4]
    $region5: #{tpu_custom_call.1} parent=1 // pred_fallthru
      _
    // Predicated region
    $region6: #{tpu_custom_call.1} parent=1 // pred_check
      _
    $region7: #{tpu_custom_call.1} parent=1 // pred_check_branch
      %21 = sbr.rel (0) target = $region9
    $region8: #{tpu_custom_call.1} parent=1 // pred_region
      _
    $region9: #{tpu_custom_call.1} parent=1 // pred_fallthru
      _
    // Predicated region
    $region10: #{tpu_custom_call.1} parent=1 // pred_check
      _
    $region11: #{tpu_custom_call.1} parent=1 // pred_check_branch
      %23 = sbr.rel (0) target = $region13
    $region12: #{tpu_custom_call.1} parent=1 // pred_region
      _
    $region13: #{tpu_custom_call.1} parent=1 // pred_fallthru
      _
    // Predicated region
    $region14: #{tpu_custom_call.1} parent=1 // pred_check
      _
    $region15: #{tpu_custom_call.1} parent=1 // pred_check_branch
      %25 = sbr.rel (0) target = $region17
    $region16: #{tpu_custom_call.1} parent=1 // pred_region
      %26 = dma.done [#allocation4], 128
    $region17: #{tpu_custom_call.1} parent=1 // pred_fallthru
      _
    %v27 = vld [vmem:[#allocation3] sm:$0xff]
    %v28 = vld [vmem:[%s1] sm:$0x1]
    %v30 = vlaneseq
    %v31 = vshrl.u32 %v30, 7
    %v32 = vsub.s32 0, %v31
    %v33 = vrot.slane %v28, %v32
    %v35 = vmul.f32 %v27, %v33
    %vm36 = vcmask 261120
    %v37 = vsel %vm36, %v35, 0.0
    %38 = vadd.xlane.f32.xlu0 %v37
    %v39 = vpop.xlane.xlu0 %38
    %s40 = sld [smem:[#allocation2]]
    %v41 = vstv %s40
    %v42 = vadd.f32 %v39, %v41
    %v43 = vxor.u32 %v42, 2147483648
    %v44 = vmul.f32 %v43, 1.442695
    %v45 = vpow.pop %v44
    %v46 = vadd.f32 %v45, 1.0
    %v47 = vrcp.pop %v46
    %v48 = vmul.f32 1.0, %v47
    %vm49 = vcmask 7168
    %50 = vst.msk [vmem:[%s3] sm:$0xff] %vm49, %v48
    // Predicated region
    $region18: #{tpu_custom_call.1} parent=1 // pred_check
      _
    $region19: #{tpu_custom_call.1} parent=1 // pred_check_branch
      %52 = sbr.rel (0) target = $region21
    $region20: #{tpu_custom_call.1} parent=1 // pred_region
      _
    $region21: #{tpu_custom_call.1} parent=1 // pred_fallthru
      _
    // Predicated region
    $region22: #{tpu_custom_call.1} parent=1 // pred_check
      _
    $region23: #{tpu_custom_call.1} parent=1 // pred_check_branch
      %54 = sbr.rel (0) target = $region25
    $region24: #{tpu_custom_call.1} parent=1 // pred_region
      _
    $region25: #{tpu_custom_call.1} parent=1 // pred_fallthru
      _
    %55 = vsyncpa [#allocation4], 1

</llo_original>
